<compile_context>
chip_gen: v5e
topology: v5e:2x2
jax: 0.10.0
libtpu: 0.0.40
codegen_flags: <defaults>
</compile_context>

<pallas_src>
from functools import partial

import jax
import jax.numpy as jnp
import numpy as np
from jax.experimental import pallas as pl
from jax.experimental.pallas import tpu as pltpu


def _round_up(x: int, m: int) -> int:
    return (x + m - 1) // m * m


def _maybe_pad2d(a, rows, cols):
    """Zero-pad a 2-D array to (rows, cols); no-op (no copy) if already sized."""
    r, c = a.shape
    if r == rows and c == cols:
        return a
    return jnp.pad(a, ((0, rows - r), (0, cols - c)))


def adapter_mlp_kernel(x_ref, w1_ref, b1_ref, w2_ref, b2_ref, out_ref):
    """One batch tile: out = relu(x @ W1 + b1) @ W2 + b2 (f32 accumulation)."""
    x = x_ref[...]
    h = jnp.dot(x, w1_ref[...], preferred_element_type=jnp.float32) + b1_ref[...]
    h = jnp.maximum(h, 0.0)
    out = jnp.dot(h, w2_ref[...], preferred_element_type=jnp.float32) + b2_ref[...]
    out_ref[...] = out.astype(out_ref.dtype)


@partial(jax.jit, static_argnames=("tb",))
def adapter_mlp_forward(x, w1, b1, w2, b2, *, tb=None):
    """x: (B, input_size); w1: (input_size, hidden); w2: (hidden, num_classes).

    b1 / b2 are 1-D (PyTorch-style).  Weights are stored (in, out) so the
    kernel computes x @ W + b directly.
    """
    B, K = x.shape
    H = w1.shape[1]
    N = w2.shape[1]
    assert w1.shape[0] == K and w2.shape[0] == H
    assert b1.shape == (H,) and b2.shape == (N,)

    # --- lane-dense padding (multiples of 128 on the lane axis) -------------
    Kp = _round_up(K, 128)
    Hp = _round_up(H, 128)
    Np = _round_up(N, 128)

    # --- batch tile: MXU-friendly 256 rows for large batches, one minimal
    #     sublane-aligned tile for tiny ones.
    if tb is None:
        tb = 256 if B >= 256 else _round_up(B, 8)
    Bp = _round_up(B, tb)

    f32 = jnp.float32
    xp = _maybe_pad2d(x.astype(f32), Bp, Kp)
    w1p = _maybe_pad2d(w1.astype(f32), Kp, Hp)
    b1p = _maybe_pad2d(b1.astype(f32).reshape(1, H), 1, Hp)
    w2p = _maybe_pad2d(w2.astype(f32), Hp, Np)
    b2p = _maybe_pad2d(b2.astype(f32).reshape(1, N), 1, Np)

    # --- explicit VMEM budget: resident weights (x2 conservative for
    #     compiler buffering) + double-buffered x/out tiles + headroom,
    #     clamped to [16 MiB, 48 MiB] so it also fits v7x's 64 MiB VMEM.
    bpe = 4  # bytes per f32 element
    resident = (Kp * Hp + Hp * Np + Hp + Np) * bpe
    pipelined = 2 * tb * (Kp + Np) * bpe
    vmem_bytes = int(min(48 * 1024 * 1024,
                         max(2 * resident + pipelined + (4 << 20),
                             16 * 1024 * 1024)))

    grid = (Bp // tb,)

    flops = 2 * Bp * (Kp * Hp + Hp * Np)
    bytes_accessed = (Bp * Kp + Kp * Hp + Hp * Np + Hp + Np + Bp * Np) * bpe

    out_padded = pl.pallas_call(
        adapter_mlp_kernel,
        out_shape=jax.ShapeDtypeStruct((Bp, Np), f32),
        grid=grid,
        in_specs=[
            pl.BlockSpec((tb, Kp), lambda i: (i, 0)),   # x: tiled over batch
            pl.BlockSpec((Kp, Hp), lambda i: (0, 0)),   # W1: VMEM-resident
            pl.BlockSpec((1, Hp), lambda i: (0, 0)),    # b1: resident
            pl.BlockSpec((Hp, Np), lambda i: (0, 0)),   # W2: resident
            pl.BlockSpec((1, Np), lambda i: (0, 0)),    # b2: resident
        ],
        out_specs=pl.BlockSpec((tb, Np), lambda i: (i, 0)),
        compiler_params=pltpu.CompilerParams(
            dimension_semantics=("parallel",),          # megacore sharding on v7x
            vmem_limit_bytes=vmem_bytes,
        ),
        cost_estimate=pl.CostEstimate(
            flops=flops, transcendentals=0, bytes_accessed=bytes_accessed),
    )(xp, w1p, b1p, w2p, b2p)

    # Slice off batch / class padding outside the kernel (lane-dense writes
    # happen inside; the slice is a cheap XLA op).
    return out_padded[:B, :N]


if __name__ == "__main__":
    # Small shapes consistent with AdapterMLP.forward: x is (batch, input_size).
    B = 2
    input_size = 16
    hidden_size = 32
    num_classes = 8

    key = jax.random.PRNGKey(0)
    kx, k1, kb1, k2, kb2 = jax.random.split(key, 5)

    x = jax.random.normal(kx, (B, input_size), dtype=jnp.float32)

    # PyTorch Linear stores (out, in); we keep the transposed (in, out) layout
    # so the kernel computes x @ W + b directly.
    w1 = jax.random.normal(k1, (input_size, hidden_size), dtype=jnp.float32) * 0.05
    b1 = jax.random.normal(kb1, (hidden_size,), dtype=jnp.float32) * 0.01
    w2 = jax.random.normal(k2, (hidden_size, num_classes), dtype=jnp.float32) * 0.05
    b2 = jax.random.normal(kb2, (num_classes,), dtype=jnp.float32) * 0.01

    out = jax.block_until_ready(adapter_mlp_forward(x, w1, b1, w2, b2))

    # Pure-JAX reference (same semantics as the PyTorch forward).
    h_ref = jnp.maximum(x @ w1 + b1[None, :], 0.0)
    out_ref = h_ref @ w2 + b2[None, :]

    np.testing.assert_allclose(np.asarray(out), np.asarray(out_ref), rtol=1e-5, atol=1e-5)
    assert out.shape == (B, num_classes)
    print("KERNEL_OK")
</pallas_src>

<mosaic_0001>
module attributes {stable_mosaic.version = 11 : i64} {
  func.func @adapter_mlp_kernel(%arg0: i32, %arg1: memref<8x128xf32, #tpu.memory_space<vmem>>, %arg2: memref<128x128xf32, #tpu.memory_space<vmem>>, %arg3: memref<1x128xf32, #tpu.memory_space<vmem>>, %arg4: memref<128x128xf32, #tpu.memory_space<vmem>>, %arg5: memref<1x128xf32, #tpu.memory_space<vmem>>, %arg6: memref<8x128xf32, #tpu.memory_space<vmem>>) attributes {dimension_semantics = [#tpu.dimension_semantics<parallel>], iteration_bounds = array<i64: 1>, scalar_prefetch = 0 : i64, scratch_operands = 0 : i64, tpu.core_type = #tpu.core_type<tc>, window_params = [{transform_indices = @transform_0, window_bounds = array<i64: 8, 128>}, {pipeline_mode = #tpu.pipeline_mode<synchronous>, transform_indices = @transform_1, window_bounds = array<i64: 128, 128>}, {pipeline_mode = #tpu.pipeline_mode<synchronous>, transform_indices = @transform_2, window_bounds = array<i64: 1, 128>}, {pipeline_mode = #tpu.pipeline_mode<synchronous>, transform_indices = @transform_3, window_bounds = array<i64: 128, 128>}, {pipeline_mode = #tpu.pipeline_mode<synchronous>, transform_indices = @transform_4, window_bounds = array<i64: 1, 128>}, {transform_indices = @transform_5, window_bounds = array<i64: 8, 128>}]} {
    %c0 = arith.constant 0 : index
    %c0_0 = arith.constant 0 : index
    %0 = vector.load %arg1[%c0, %c0_0] : memref<8x128xf32, #tpu.memory_space<vmem>>, vector<8x128xf32>
    %c0_1 = arith.constant 0 : index
    %c0_2 = arith.constant 0 : index
    %1 = vector.load %arg2[%c0_1, %c0_2] : memref<128x128xf32, #tpu.memory_space<vmem>>, vector<128x128xf32>
    %cst = arith.constant dense<0.000000e+00> : vector<8x128xf32>
    %2 = tpu.matmul %0, %1, %cst {dimension_numbers = #tpu.dot_dimension_numbers<[1], [0], [0], [1], [0, 0, 1, 1], [], []>} : vector<8x128xf32>, vector<128x128xf32>, vector<8x128xf32> -> vector<8x128xf32>
    %c0_3 = arith.constant 0 : index
    %c0_4 = arith.constant 0 : index
    %3 = vector.load %arg3[%c0_3, %c0_4] : memref<1x128xf32, #tpu.memory_space<vmem>>, vector<1x128xf32>
    %4 = vector.broadcast %3 : vector<1x128xf32> to vector<8x128xf32>
    %5 = arith.addf %2, %4 : vector<8x128xf32>
    %cst_5 = arith.constant 0.000000e+00 : f32
    %6 = vector.broadcast %cst_5 : f32 to vector<8x128xf32>
    %7 = arith.maximumf %5, %6 : vector<8x128xf32>
    %c0_6 = arith.constant 0 : index
    %c0_7 = arith.constant 0 : index
    %8 = vector.load %arg4[%c0_6, %c0_7] : memref<128x128xf32, #tpu.memory_space<vmem>>, vector<128x128xf32>
    %cst_8 = arith.constant dense<0.000000e+00> : vector<8x128xf32>
    %9 = tpu.matmul %7, %8, %cst_8 {dimension_numbers = #tpu.dot_dimension_numbers<[1], [0], [0], [1], [0, 0, 1, 1], [], []>} : vector<8x128xf32>, vector<128x128xf32>, vector<8x128xf32> -> vector<8x128xf32>
    %c0_9 = arith.constant 0 : index
    %c0_10 = arith.constant 0 : index
    %10 = vector.load %arg5[%c0_9, %c0_10] : memref<1x128xf32, #tpu.memory_space<vmem>>, vector<1x128xf32>
    %11 = vector.broadcast %10 : vector<1x128xf32> to vector<8x128xf32>
    %12 = arith.addf %9, %11 : vector<8x128xf32>
    %c0_11 = arith.constant 0 : index
    %c0_12 = arith.constant 0 : index
    %13 = vector.load %arg6[%c0_11, %c0_12] : memref<8x128xf32, #tpu.memory_space<vmem>>, vector<8x128xf32>
    tpu.vector_store %arg6[%c0_11, %c0_12], %12 {strides = array<i32>} : memref<8x128xf32, #tpu.memory_space<vmem>>, vector<8x128xf32>,
    return
  }
  func.func @transform_0(%arg0: i32) -> (i32, i32) {
    %c0_i32 = arith.constant 0 : i32
    %c0_i32_0 = arith.constant 0 : i32
    return %arg0, %c0_i32 : i32, i32
  }
  func.func @transform_1(%arg0: i32) -> (i32, i32) {
    %c0_i32 = arith.constant 0 : i32
    %c0_i32_0 = arith.constant 0 : i32
    %c0_i32_1 = arith.constant 0 : i32
    return %c0_i32, %c0_i32_0 : i32, i32
  }
  func.func @transform_2(%arg0: i32) -> (i32, i32) {
    %c0_i32 = arith.constant 0 : i32
    %c0_i32_0 = arith.constant 0 : i32
    %c0_i32_1 = arith.constant 0 : i32
    return %c0_i32, %c0_i32_0 : i32, i32
  }
  func.func @transform_3(%arg0: i32) -> (i32, i32) {
    %c0_i32 = arith.constant 0 : i32
    %c0_i32_0 = arith.constant 0 : i32
    %c0_i32_1 = arith.constant 0 : i32
    return %c0_i32, %c0_i32_0 : i32, i32
  }
  func.func @transform_4(%arg0: i32) -> (i32, i32) {
    %c0_i32 = arith.constant 0 : i32
    %c0_i32_0 = arith.constant 0 : i32
    %c0_i32_1 = arith.constant 0 : i32
    return %c0_i32, %c0_i32_0 : i32, i32
  }
  func.func @transform_5(%arg0: i32) -> (i32, i32) {
    %c0_i32 = arith.constant 0 : i32
    %c0_i32_0 = arith.constant 0 : i32
    return %arg0, %c0_i32 : i32, i32
  }
}

</mosaic_0001>

<llo_original>
// kernel: adapter_mlp_forward.1
$region0: #{adapter_mlp_forward.1}
  #allocation0 [shape = 'u32[]', space=smem, size = 0x4, offset = 0x4, fixed_abs, tag = 'smem constant byte address 0x4 - core index']
  #allocation1 [shape = 'u32[72,128]{1,0:T(1,128)}', space=vmem, size = 0x9000, scoped, tag = 'internal scratch']
  %s0 = inlined_call_operand.vmem [shape: f32[8,128], index: 0, kind: input, shape index: {}]
  %s1 = inlined_call_operand.vmem [shape: f32[128,128], index: 1, kind: input, shape index: {}]
  %s2 = inlined_call_operand.vmem [shape: f32[1,128], index: 2, kind: input, shape index: {}]
  %s3 = inlined_call_operand.vmem [shape: f32[128,128], index: 3, kind: input, shape index: {}]
  %s4 = inlined_call_operand.vmem [shape: f32[1,128], index: 4, kind: input, shape index: {}]
  %s5 = inlined_call_operand.vmem [shape: f32[8,128], index: 5, kind: output, shape index: {}]
  %s6 = sld [smem:[#allocation0]]
  $region30: #{adapter_mlp_forward.1} parent=0
    _
  %s8 = ssub.s32 1, %s6
  %s9 = scalar_select 0, %s8, %s6
  // Predicated region
  $region2: #{adapter_mlp_forward.1} parent=0 // pred_check
    _
  $region3: #{adapter_mlp_forward.1} parent=0 // pred_check_branch
    %11 = sbr.rel (0) target = $region5
  $region4: #{adapter_mlp_forward.1} parent=0 // pred_region
    _
  $region5: #{adapter_mlp_forward.1} parent=0 // pred_fallthru
    _
  // Predicated region
  $region6: #{adapter_mlp_forward.1} parent=0 // pred_check
    _
  $region7: #{adapter_mlp_forward.1} parent=0 // pred_check_branch
    %13 = sbr.rel (0) target = $region9
  $region8: #{adapter_mlp_forward.1} parent=0 // pred_region
    _
  $region9: #{adapter_mlp_forward.1} parent=0 // pred_fallthru
    _
  // Predicated region
  $region10: #{adapter_mlp_forward.1} parent=0 // pred_check
    _
  $region11: #{adapter_mlp_forward.1} parent=0 // pred_check_branch
    %15 = sbr.rel (0) target = $region13
  $region12: #{adapter_mlp_forward.1} parent=0 // pred_region
    _
  $region13: #{adapter_mlp_forward.1} parent=0 // pred_fallthru
    _
  // Predicated region
  $region14: #{adapter_mlp_forward.1} parent=0 // pred_check
    _
  $region15: #{adapter_mlp_forward.1} parent=0 // pred_check_branch
    %17 = sbr.rel (0) target = $region17
  $region16: #{adapter_mlp_forward.1} parent=0 // pred_region
    _
  $region17: #{adapter_mlp_forward.1} parent=0 // pred_fallthru
    _
  // Predicated region
  $region18: #{adapter_mlp_forward.1} parent=0 // pred_check
    _
  $region19: #{adapter_mlp_forward.1} parent=0 // pred_check_branch
    %19 = sbr.rel (0) target = $region21
  $region20: #{adapter_mlp_forward.1} parent=0 // pred_region
    _
  $region21: #{adapter_mlp_forward.1} parent=0 // pred_fallthru
    _
  %v20 = vld [vmem:[%s0] sm:$0xff]
  %v21 = vld [vmem:[%s1] sm:$0xff]
  %v22 = vld [vmem:[%s1 + $0x8] sm:$0xff]
  %v23 = vld [vmem:[%s1 + $0x10] sm:$0xff]
  %v24 = vld [vmem:[%s1 + $0x18] sm:$0xff]
  %v25 = vld [vmem:[%s1 + $0x20] sm:$0xff]
  %v26 = vld [vmem:[%s1 + $0x28] sm:$0xff]
  %v27 = vld [vmem:[%s1 + $0x30] sm:$0xff]
  %v28 = vld [vmem:[%s1 + $0x38] sm:$0xff]
  %v29 = vld [vmem:[%s1 + $0x40] sm:$0xff]
  %v30 = vld [vmem:[%s1 + $0x48] sm:$0xff]
  %v31 = vld [vmem:[%s1 + $0x50] sm:$0xff]
  %v32 = vld [vmem:[%s1 + $0x58] sm:$0xff]
  %v33 = vld [vmem:[%s1 + $0x60] sm:$0xff]
  %v34 = vld [vmem:[%s1 + $0x68] sm:$0xff]
  %v35 = vld [vmem:[%s1 + $0x70] sm:$0xff]
  %v36 = vld [vmem:[%s1 + $0x78] sm:$0xff]
  %v37 = vld [vmem:[%s2] sm:$0x1]
  %v39 = vperm.slane %v37, 0
  %41 = vmatpush.msra.mxu0 %v36
  %42 = vmatpush.msra.mxu0 %v35
  %43 = vmatpush.msra.mxu0 %v34
  %44 = vmatpush.msra.mxu0 %v33
  %45 = vmatpush.msra.mxu0 %v32
  %46 = vmatpush.msra.mxu0 %v31
  %47 = vmatpush.msra.mxu0 %v30
  %48 = vmatpush.msra.mxu0 %v29
  %49 = vmatpush.msra.mxu0 %v28
  %50 = vmatpush.msra.mxu0 %v27
  %51 = vmatpush.msra.mxu0 %v26
  %52 = vmatpush.msra.mxu0 %v25
  %53 = vmatpush.msra.mxu0 %v24
  %54 = vmatpush.msra.mxu0 %v23
  %55 = vmatpush.msra.mxu0 %v22
  %56 = vmatpush.msra.mxu0 %v21
  %57 = vmatmul.f32.gmra.mxu0 %v20
  %v58 = vpop.f32.mrf.mxu0
  %v59 = vadd.f32 %v39, %v58
  %60 = vdwg.mxu0
  %v61 = vmax.f32 %v59, 0.0
  %v62 = vld [vmem:[%s3] sm:$0xff]
  %v63 = vld [vmem:[%s3 + $0x8] sm:$0xff]
  %v64 = vld [vmem:[%s3 + $0x10] sm:$0xff]
  %v65 = vld [vmem:[%s3 + $0x18] sm:$0xff]
  %v66 = vld [vmem:[%s3 + $0x20] sm:$0xff]
  %v67 = vld [vmem:[%s3 + $0x28] sm:$0xff]
  %v68 = vld [vmem:[%s3 + $0x30] sm:$0xff]
  %v69 = vld [vmem:[%s3 + $0x38] sm:$0xff]
  %v70 = vld [vmem:[%s3 + $0x40] sm:$0xff]
  %v71 = vld [vmem:[%s3 + $0x48] sm:$0xff]
  %v72 = vld [vmem:[%s3 + $0x50] sm:$0xff]
  %v73 = vld [vmem:[%s3 + $0x58] sm:$0xff]
  %v74 = vld [vmem:[%s3 + $0x60] sm:$0xff]
  %v75 = vld [vmem:[%s3 + $0x68] sm:$0xff]
  %v76 = vld [vmem:[%s3 + $0x70] sm:$0xff]
  %v77 = vld [vmem:[%s3 + $0x78] sm:$0xff]
  %v78 = vld [vmem:[%s4] sm:$0x1]
  %v80 = vperm.slane %v78, 0
  %82 = vmatpush.msra.mxu0 %v77
  %83 = vmatpush.msra.mxu0 %v76
  %84 = vmatpush.msra.mxu0 %v75
  %85 = vmatpush.msra.mxu0 %v74
  %86 = vmatpush.msra.mxu0 %v73
  %87 = vmatpush.msra.mxu0 %v72
  %88 = vmatpush.msra.mxu0 %v71
  %89 = vmatpush.msra.mxu0 %v70
  %90 = vmatpush.msra.mxu0 %v69
  %91 = vmatpush.msra.mxu0 %v68
  %92 = vmatpush.msra.mxu0 %v67
  %93 = vmatpush.msra.mxu0 %v66
  %94 = vmatpush.msra.mxu0 %v65
  %95 = vmatpush.msra.mxu0 %v64
  %96 = vmatpush.msra.mxu0 %v63
  %97 = vmatpush.msra.mxu0 %v62
  %98 = vmatmul.f32.gmra.mxu0 %v61
  %v99 = vpop.f32.mrf.mxu0
  %v100 = vadd.f32 %v80, %v99
  %101 = vdwg.mxu0
  %102 = vst [vmem:[%s5] sm:$0xff] %v100
  // Predicated region
  $region22: #{adapter_mlp_forward.1} parent=0 // pred_check
    _
  $region23: #{adapter_mlp_forward.1} parent=0 // pred_check_branch
    %104 = sbr.rel (0) target = $region25
  $region24: #{adapter_mlp_forward.1} parent=0 // pred_region
    _
  $region25: #{adapter_mlp_forward.1} parent=0 // pred_fallthru
    _
  // Predicated region
  $region26: #{adapter_mlp_forward.1} parent=0 // pred_check
    _
  $region27: #{adapter_mlp_forward.1} parent=0 // pred_check_branch
    %106 = sbr.rel (0) target = $region29
  $region28: #{adapter_mlp_forward.1} parent=0 // pred_region
    _
  $region29: #{adapter_mlp_forward.1} parent=0 // pred_fallthru
    _

</llo_original>
